<compile_context>
chip_gen: v5e
topology: v5e:2x2
jax: 0.10.0
libtpu: 0.0.40
codegen_flags: <defaults>
</compile_context>

<pallas_src>
import math
import functools

import jax
import jax.numpy as jnp
import numpy as np
from jax.experimental import pallas as pl
from jax.experimental.pallas import tpu as pltpu


def _round_up(x, m):
    return ((x + m - 1) // m) * m


# ----------------------------------------------------------------------------
# Fused kernel: quantize fc1.scores + relu(x @ W1_eff^T) @ W2_eff^T, using the
# replicated-tile structure of W1_eff so it is never materialized.
#   x_ref  : (B, Kp)  zero-padded activations
#   s1_ref : (H, Kp)  zero-padded fc1 scores (PyTorch (out, in) layout)
#   w2t_ref: (H, Op)  fc2 effective weight, transposed + lane-padded
#   o_ref  : (B, Op)  lane-dense output slab (first O lanes = logits)
# ----------------------------------------------------------------------------
def fused_tilednn_kernel(x_ref, s1_ref, w2t_ref, o_ref, *, cf, inv_tile1):
    H, Kp = s1_ref.shape
    rpt = H // cf  # rows per flat tile (tiles are whole rows: H % cf == 0)

    # Single pass over scores1 tiles: accumulate the signed sum (-> sign) and
    # the per-tile |.| sum (-> alpha_t) from one load of each tile.
    # Static, sublane-aligned (rpt == 8) slices -> free, lane-dense views.
    agg = s1_ref[0:rpt, :]
    alphas = [jnp.sum(jnp.abs(agg), keepdims=True) * inv_tile1]       # (1, 1)
    for t in range(1, cf):
        tile = s1_ref[t * rpt:(t + 1) * rpt, :]
        agg = agg + tile
        alphas.append(jnp.sum(jnp.abs(tile), keepdims=True) * inv_tile1)
    sign = jnp.where(agg > 0, 1.0, -1.0)              # (rpt, Kp), ties -> -1

    # p = x @ sign^T : only rpt output columns instead of H (fc1 MXU work / cf).
    p = jax.lax.dot_general(x_ref[...], sign, (((1,), (1,)), ((), ())),
                            preferred_element_type=jnp.float32)       # (B, rpt)
    # alpha_t >= 0  =>  relu(alpha_t * p) == alpha_t * relu(p): relu once.
    rp = jnp.maximum(p, 0.0)

    # Fold the fc1 per-tile alphas into fc2:
    #   W2c[r, o] = sum_t alpha_t * W2_eff^T[t*rpt + r, o]
    w2c = alphas[0] * w2t_ref[0:rpt, :]
    for t in range(1, cf):
        w2c = w2c + alphas[t] * w2t_ref[t * rpt:(t + 1) * rpt, :]     # (rpt, Op)

    # Lane-dense epilogue: (B, rpt) @ (rpt, Op) -> (B, Op), canonical contraction.
    o_ref[...] = jnp.dot(rp, w2c,
                         preferred_element_type=jnp.float32).astype(o_ref.dtype)


# ----------------------------------------------------------------------------
# General flat-tiled quantization (used for fc2's 320 floats in the wrapper and
# as the pure-JAX reference). Mirrors GetSubnetBinaryTiled + alpha_scaling.
# ----------------------------------------------------------------------------
def quantize_flat_tiled(scores, cf):
    out_f, in_f = scores.shape
    tile = (out_f * in_f) // cf
    s2 = scores.reshape(cf, tile)
    agg = jnp.sum(s2, axis=0)
    sign = jnp.where(agg > 0, 1.0, -1.0)
    alpha = jnp.sum(jnp.abs(s2), axis=1) * (1.0 / float(tile))
    return (sign[None, :] * alpha[:, None]).reshape(out_f, in_f)


@functools.partial(jax.jit, static_argnames=("cf",))
def tiled_nn_forward(x, scores1, scores2, cf):
    """x: (B, 784); scores1: (H, 784); scores2: (10, H) -> logits (B, 10)."""
    B, K = x.shape
    H, K1 = scores1.shape
    O, H2 = scores2.shape
    assert K == K1 and H == H2
    assert (H * K) % cf == 0 and (O * H) % cf == 0
    # The in-kernel fc1 quantization uses the row-aligned tile view, which is
    # exact exactly when the flat tiles cover whole weight rows.
    assert H % cf == 0, "fc1 flat tiles must align to whole weight rows"

    Kp = _round_up(K, 128)                 # 784 -> 896: lane-dense K
    Op = max(128, _round_up(O, 128))       # 10  -> 128: lane-dense output slab

    # Zero padding is inert: padded x columns are 0, alpha uses the original
    # tile size, padded output lanes are sliced off below.
    x_p = jnp.pad(x, ((0, 0), (0, Kp - K)))
    s1_p = jnp.pad(scores1, ((0, 0), (0, Kp - K)))

    # fc2 effective weight (320 floats): quantized by XLA in this same jit,
    # pre-transposed + lane-padded so the kernel's second matmul is canonical.
    w2_eff = quantize_flat_tiled(scores2, cf)                 # (O, H)
    w2t = jnp.pad(w2_eff.T, ((0, 0), (0, Op - O)))            # (H, Op)

    inv_tile1 = 1.0 / float((H * K) // cf)
    kernel = functools.partial(fused_tilednn_kernel, cf=cf, inv_tile1=inv_tile1)

    out_p = pl.pallas_call(
        kernel,
        out_shape=jax.ShapeDtypeStruct((B, Op), jnp.float32),
        grid=(1,),
        in_specs=[
            pl.BlockSpec((B, Kp), lambda i: (0, 0)),
            pl.BlockSpec((H, Kp), lambda i: (0, 0)),
            pl.BlockSpec((H, Op), lambda i: (0, 0)),
        ],
        out_specs=pl.BlockSpec((B, Op), lambda i: (0, 0)),
        compiler_params=pltpu.CompilerParams(
            dimension_semantics=("arbitrary",)),
    )(x_p, s1_p, w2t)
    return out_p[:, :O]


# ----------------------------------------------------------------------------
# Pure-JAX reference (mirrors the PyTorch semantics) for a correctness check
# ----------------------------------------------------------------------------
def forward_ref(x, scores1, scores2, cf):
    w1 = quantize_flat_tiled(scores1, cf)
    w2 = quantize_flat_tiled(scores2, cf)
    h = jnp.maximum(
        jnp.dot(x, w1.T, precision=jax.lax.Precision.HIGHEST), 0.0)
    return jnp.dot(h, w2.T, precision=jax.lax.Precision.HIGHEST)


# ----------------------------------------------------------------------------
def kaiming_uniform_scores(key, shape):
    # nn.init.kaiming_uniform_(scores, a=sqrt(5)) -> bound = 1/sqrt(fan_in)
    fan_in = shape[1]
    bound = 1.0 / math.sqrt(fan_in)
    return jax.random.uniform(key, shape, jnp.float32, -bound, bound)


if __name__ == "__main__":
    batch = 2
    in_features = 784
    hidden_size = 32
    out_features = 10
    compression_factor = 4  # divides 784*32 and 32*10; 32 % 4 == 0 (row-aligned)

    root = jax.random.PRNGKey(0)
    kx, k1, k2 = jax.random.split(root, 3)

    x = jax.random.normal(kx, (batch, in_features), jnp.float32)
    scores1 = kaiming_uniform_scores(k1, (hidden_size, in_features))   # fc1.scores
    scores2 = kaiming_uniform_scores(k2, (out_features, hidden_size))  # fc2.scores
    # TODO(synk): the underlying nn.Linear `weight` params are unused in forward
    # when args.alpha_param == 'scores', so they are not materialized here.

    out = tiled_nn_forward(x, scores1, scores2, compression_factor)
    out = jax.block_until_ready(out)

    ref = forward_ref(x, scores1, scores2, compression_factor)
    np.testing.assert_allclose(np.asarray(out), np.asarray(ref),
                               rtol=1e-4, atol=5e-5)
    print("KERNEL_OK")
</pallas_src>

<mosaic_0001>
module attributes {stable_mosaic.version = 11 : i64} {
  func.func @fused_tilednn_kernel(%arg0: i32, %arg1: memref<2x896xf32, #tpu.memory_space<vmem>>, %arg2: memref<32x896xf32, #tpu.memory_space<vmem>>, %arg3: memref<32x128xf32, #tpu.memory_space<vmem>>, %arg4: memref<2x128xf32, #tpu.memory_space<vmem>>) attributes {dimension_semantics = [#tpu.dimension_semantics<arbitrary>], iteration_bounds = array<i64: 1>, scalar_prefetch = 0 : i64, scratch_operands = 0 : i64, tpu.core_type = #tpu.core_type<tc>, window_params = [{pipeline_mode = #tpu.pipeline_mode<synchronous>, transform_indices = @transform_0, window_bounds = array<i64: 2, 896>}, {pipeline_mode = #tpu.pipeline_mode<synchronous>, transform_indices = @transform_1, window_bounds = array<i64: 32, 896>}, {pipeline_mode = #tpu.pipeline_mode<synchronous>, transform_indices = @transform_2, window_bounds = array<i64: 32, 128>}, {pipeline_mode = #tpu.pipeline_mode<synchronous>, transform_indices = @transform_3, window_bounds = array<i64: 2, 128>}]} {
    %c0 = arith.constant 0 : index
    %c0_0 = arith.constant 0 : index
    %0 = vector.load %arg2[%c0, %c0_0] : memref<32x896xf32, #tpu.memory_space<vmem>>, vector<8x896xf32>
    %1 = math.absf %0 : vector<8x896xf32>
    %2 = vector.shape_cast %1 : vector<8x896xf32> to vector<1x8x896xf32>
    %cst = arith.constant dense<0.000000e+00> : vector<1xf32>
    %3 = vector.multi_reduction <add>, %2, %cst [1, 2] : vector<1x8x896xf32> to vector<1xf32>
    %4 = vector.shape_cast %3 : vector<1xf32> to vector<1x1x1xf32>
    %5 = vector.extract %4[0, 0, 0] : f32 from vector<1x1x1xf32>
    %6 = vector.broadcast %5 : f32 to vector<1x1xf32>
    %cst_1 = arith.constant 1.59438772E-4 : f32
    %7 = vector.broadcast %cst_1 : f32 to vector<1x1xf32>
    %8 = arith.mulf %6, %7 : vector<1x1xf32>
    %c8 = arith.constant 8 : index
    %c0_2 = arith.constant 0 : index
    %9 = vector.load %arg2[%c8, %c0_2] : memref<32x896xf32, #tpu.memory_space<vmem>>, vector<8x896xf32>
    %10 = arith.addf %0, %9 : vector<8x896xf32>
    %11 = math.absf %9 : vector<8x896xf32>
    %12 = vector.shape_cast %11 : vector<8x896xf32> to vector<1x8x896xf32>
    %cst_3 = arith.constant dense<0.000000e+00> : vector<1xf32>
    %13 = vector.multi_reduction <add>, %12, %cst_3 [1, 2] : vector<1x8x896xf32> to vector<1xf32>
    %14 = vector.shape_cast %13 : vector<1xf32> to vector<1x1x1xf32>
    %15 = vector.extract %14[0, 0, 0] : f32 from vector<1x1x1xf32>
    %16 = vector.broadcast %15 : f32 to vector<1x1xf32>
    %cst_4 = arith.constant 1.59438772E-4 : f32
    %17 = vector.broadcast %cst_4 : f32 to vector<1x1xf32>
    %18 = arith.mulf %16, %17 : vector<1x1xf32>
    %c16 = arith.constant 16 : index
    %c0_5 = arith.constant 0 : index
    %19 = vector.load %arg2[%c16, %c0_5] : memref<32x896xf32, #tpu.memory_space<vmem>>, vector<8x896xf32>
    %20 = arith.addf %10, %19 : vector<8x896xf32>
    %21 = math.absf %19 : vector<8x896xf32>
    %22 = vector.shape_cast %21 : vector<8x896xf32> to vector<1x8x896xf32>
    %cst_6 = arith.constant dense<0.000000e+00> : vector<1xf32>
    %23 = vector.multi_reduction <add>, %22, %cst_6 [1, 2] : vector<1x8x896xf32> to vector<1xf32>
    %24 = vector.shape_cast %23 : vector<1xf32> to vector<1x1x1xf32>
    %25 = vector.extract %24[0, 0, 0] : f32 from vector<1x1x1xf32>
    %26 = vector.broadcast %25 : f32 to vector<1x1xf32>
    %cst_7 = arith.constant 1.59438772E-4 : f32
    %27 = vector.broadcast %cst_7 : f32 to vector<1x1xf32>
    %28 = arith.mulf %26, %27 : vector<1x1xf32>
    %c24 = arith.constant 24 : index
    %c0_8 = arith.constant 0 : index
    %29 = vector.load %arg2[%c24, %c0_8] : memref<32x896xf32, #tpu.memory_space<vmem>>, vector<8x896xf32>
    %30 = arith.addf %20, %29 : vector<8x896xf32>
    %31 = math.absf %29 : vector<8x896xf32>
    %32 = vector.shape_cast %31 : vector<8x896xf32> to vector<1x8x896xf32>
    %cst_9 = arith.constant dense<0.000000e+00> : vector<1xf32>
    %33 = vector.multi_reduction <add>, %32, %cst_9 [1, 2] : vector<1x8x896xf32> to vector<1xf32>
    %34 = vector.shape_cast %33 : vector<1xf32> to vector<1x1x1xf32>
    %35 = vector.extract %34[0, 0, 0] : f32 from vector<1x1x1xf32>
    %36 = vector.broadcast %35 : f32 to vector<1x1xf32>
    %cst_10 = arith.constant 1.59438772E-4 : f32
    %37 = vector.broadcast %cst_10 : f32 to vector<1x1xf32>
    %38 = arith.mulf %36, %37 : vector<1x1xf32>
    %cst_11 = arith.constant 0.000000e+00 : f32
    %39 = vector.broadcast %cst_11 : f32 to vector<8x896xf32>
    %40 = arith.cmpf ogt, %30, %39 : vector<8x896xf32>
    %cst_12 = arith.constant 1.000000e+00 : f32
    %cst_13 = arith.constant -1.000000e+00 : f32
    %41 = vector.broadcast %cst_12 : f32 to vector<8x896xf32>
    %42 = vector.broadcast %cst_13 : f32 to vector<8x896xf32>
    %43 = arith.select %40, %41, %42 : vector<8x896xi1>, vector<8x896xf32>
    %c0_14 = arith.constant 0 : index
    %c0_15 = arith.constant 0 : index
    %44 = vector.load %arg1[%c0_14, %c0_15] : memref<2x896xf32, #tpu.memory_space<vmem>>, vector<2x896xf32>
    %cst_16 = arith.constant dense<0.000000e+00> : vector<2x8xf32>
    %45 = tpu.matmul %44, %43, %cst_16 {dimension_numbers = #tpu.dot_dimension_numbers<[1], [1], [0], [0], [0, 0, 1, 0], [], []>} : vector<2x896xf32>, vector<8x896xf32>, vector<2x8xf32> -> vector<2x8xf32>
    %cst_17 = arith.constant 0.000000e+00 : f32
    %46 = vector.broadcast %cst_17 : f32 to vector<2x8xf32>
    %47 = arith.maximumf %45, %46 : vector<2x8xf32>
    %c0_18 = arith.constant 0 : index
    %c0_19 = arith.constant 0 : index
    %48 = vector.load %arg3[%c0_18, %c0_19] : memref<32x128xf32, #tpu.memory_space<vmem>>, vector<8x128xf32>
    %49 = vector.broadcast %8 : vector<1x1xf32> to vector<8x128xf32>
    %50 = arith.mulf %49, %48 : vector<8x128xf32>
    %c8_20 = arith.constant 8 : index
    %c0_21 = arith.constant 0 : index
    %51 = vector.load %arg3[%c8_20, %c0_21] : memref<32x128xf32, #tpu.memory_space<vmem>>, vector<8x128xf32>
    %52 = vector.broadcast %18 : vector<1x1xf32> to vector<8x128xf32>
    %53 = arith.mulf %52, %51 : vector<8x128xf32>
    %54 = arith.addf %50, %53 : vector<8x128xf32>
    %c16_22 = arith.constant 16 : index
    %c0_23 = arith.constant 0 : index
    %55 = vector.load %arg3[%c16_22, %c0_23] : memref<32x128xf32, #tpu.memory_space<vmem>>, vector<8x128xf32>
    %56 = vector.broadcast %28 : vector<1x1xf32> to vector<8x128xf32>
    %57 = arith.mulf %56, %55 : vector<8x128xf32>
    %58 = arith.addf %54, %57 : vector<8x128xf32>
    %c24_24 = arith.constant 24 : index
    %c0_25 = arith.constant 0 : index
    %59 = vector.load %arg3[%c24_24, %c0_25] : memref<32x128xf32, #tpu.memory_space<vmem>>, vector<8x128xf32>
    %60 = vector.broadcast %38 : vector<1x1xf32> to vector<8x128xf32>
    %61 = arith.mulf %60, %59 : vector<8x128xf32>
    %62 = arith.addf %58, %61 : vector<8x128xf32>
    %cst_26 = arith.constant dense<0.000000e+00> : vector<2x128xf32>
    %63 = tpu.matmul %47, %62, %cst_26 {dimension_numbers = #tpu.dot_dimension_numbers<[1], [0], [0], [1], [0, 0, 1, 1], [], []>} : vector<2x8xf32>, vector<8x128xf32>, vector<2x128xf32> -> vector<2x128xf32>
    %c0_27 = arith.constant 0 : index
    %c0_28 = arith.constant 0 : index
    %64 = vector.load %arg4[%c0_27, %c0_28] : memref<2x128xf32, #tpu.memory_space<vmem>>, vector<2x128xf32>
    tpu.vector_store %arg4[%c0_27, %c0_28], %63 {strides = array<i32>} : memref<2x128xf32, #tpu.memory_space<vmem>>, vector<2x128xf32>,
    return
  }
  func.func @transform_0(%arg0: i32) -> (i32, i32) {
    %c0_i32 = arith.constant 0 : i32
    %c0_i32_0 = arith.constant 0 : i32
    %c0_i32_1 = arith.constant 0 : i32
    return %c0_i32, %c0_i32_0 : i32, i32
  }
  func.func @transform_1(%arg0: i32) -> (i32, i32) {
    %c0_i32 = arith.constant 0 : i32
    %c0_i32_0 = arith.constant 0 : i32
    %c0_i32_1 = arith.constant 0 : i32
    return %c0_i32, %c0_i32_0 : i32, i32
  }
  func.func @transform_2(%arg0: i32) -> (i32, i32) {
    %c0_i32 = arith.constant 0 : i32
    %c0_i32_0 = arith.constant 0 : i32
    %c0_i32_1 = arith.constant 0 : i32
    return %c0_i32, %c0_i32_0 : i32, i32
  }
  func.func @transform_3(%arg0: i32) -> (i32, i32) {
    %c0_i32 = arith.constant 0 : i32
    %c0_i32_0 = arith.constant 0 : i32
    %c0_i32_1 = arith.constant 0 : i32
    return %c0_i32, %c0_i32_0 : i32, i32
  }
}

</mosaic_0001>

<llo_original>
// kernel: tiled_nn_forward.1
$region0: #{tiled_nn_forward.1}
  #allocation0 [shape = 'u32[]', space=smem, size = 0x4, offset = 0x4, fixed_abs, tag = 'smem constant byte address 0x4 - core index']
  #allocation1 [shape = 'u32[72,128]{1,0:T(1,128)}', space=vmem, size = 0x9000, scoped, tag = 'internal scratch']
  %s0 = inlined_call_operand.vmem [shape: f32[2,896], index: 0, kind: input, shape index: {}]
  %s1 = inlined_call_operand.vmem [shape: f32[32,896], index: 1, kind: input, shape index: {}]
  %s2 = inlined_call_operand.vmem [shape: f32[32,128], index: 2, kind: input, shape index: {}]
  %s3 = inlined_call_operand.hbm [shape: f32[2,128], index: 3, kind: output, shape index: {}]
  %s4 = sld [smem:[#allocation0]]
  $region22: #{tiled_nn_forward.1} parent=0
    _
  %s6 = ssub.s32 1, %s4
  %s7 = scalar_select 0, %s6, %s4
  $region1: #{tiled_nn_forward.1} parent=0
    #allocation2 [shape = 'u8[1024]{0}', space=vmem, size = 0x400, scoped, tag = 'output window, operand 0, single buffered']
    #allocation3 [shape = 's32[1]{0}', space=sflag, size = 0x4, scoped, tag = 'scoped memory for tiled_nn_forward.1']
    %8 = vsyncpa [#allocation3], 0
    // Predicated region
    $region2: #{tiled_nn_forward.1} parent=1 // pred_check
      _
    $region3: #{tiled_nn_forward.1} parent=1 // pred_check_branch
      %10 = sbr.rel (0) target = $region5
    $region4: #{tiled_nn_forward.1} parent=1 // pred_region
      _
    $region5: #{tiled_nn_forward.1} parent=1 // pred_fallthru
      _
    // Predicated region
    $region6: #{tiled_nn_forward.1} parent=1 // pred_check
      _
    $region7: #{tiled_nn_forward.1} parent=1 // pred_check_branch
      %12 = sbr.rel (0) target = $region9
    $region8: #{tiled_nn_forward.1} parent=1 // pred_region
      _
    $region9: #{tiled_nn_forward.1} parent=1 // pred_fallthru
      _
    // Predicated region
    $region10: #{tiled_nn_forward.1} parent=1 // pred_check
      _
    $region11: #{tiled_nn_forward.1} parent=1 // pred_check_branch
      %14 = sbr.rel (0) target = $region13
    $region12: #{tiled_nn_forward.1} parent=1 // pred_region
      _
    $region13: #{tiled_nn_forward.1} parent=1 // pred_fallthru
      _
    %v15 = vld [vmem:[%s1] sm:$0xff]
    %v16 = vld [vmem:[%s1 + $0x8] sm:$0xff]
    %v17 = vld [vmem:[%s1 + $0x10] sm:$0xff]
    %v18 = vld [vmem:[%s1 + $0x18] sm:$0xff]
    %v19 = vld [vmem:[%s1 + $0x20] sm:$0xff]
    %v20 = vld [vmem:[%s1 + $0x28] sm:$0xff]
    %v21 = vld [vmem:[%s1 + $0x30] sm:$0xff]
    %v22 = vand.u32 2147483647, %v15
    %v23 = vand.u32 2147483647, %v16
    %v24 = vand.u32 2147483647, %v17
    %v25 = vand.u32 2147483647, %v18
    %v26 = vand.u32 2147483647, %v19
    %v27 = vand.u32 2147483647, %v20
    %v28 = vand.u32 2147483647, %v21
    %v29 = vadd.f32 %v22, %v23
    %v30 = vadd.f32 %v29, %v24
    %v31 = vadd.f32 %v30, %v25
    %v32 = vadd.f32 %v31, %v26
    %v33 = vadd.f32 %v32, %v27
    %v34 = vadd.f32 %v33, %v28
    %35 = vadd.xlane.f32.xlu0 %v34
    %v36 = vpop.xlane.xlu0 %35
    %v37 = vrot.slane %v36, 4
    %v38 = vadd.f32 %v36, %v37
    %v39 = vrot.slane %v38, 2
    %v40 = vadd.f32 %v38, %v39
    %v41 = vrot.slane %v40, 1
    %v42 = vadd.f32 %v40, %v41
    %s43 = vtos %v42
    %v44 = vstv %s43
    %v45 = vmul.f32 %v44, 0.00015943877
    %v46 = vld [vmem:[%s1 + $0x38] sm:$0xff]
    %v47 = vld [vmem:[%s1 + $0x40] sm:$0xff]
    %v48 = vld [vmem:[%s1 + $0x48] sm:$0xff]
    %v49 = vld [vmem:[%s1 + $0x50] sm:$0xff]
    %v50 = vld [vmem:[%s1 + $0x58] sm:$0xff]
    %v51 = vld [vmem:[%s1 + $0x60] sm:$0xff]
    %v52 = vld [vmem:[%s1 + $0x68] sm:$0xff]
    %v53 = vadd.f32 %v15, %v46
    %v54 = vadd.f32 %v16, %v47
    %v55 = vadd.f32 %v17, %v48
    %v56 = vadd.f32 %v18, %v49
    %v57 = vadd.f32 %v19, %v50
    %v58 = vadd.f32 %v20, %v51
    %v59 = vadd.f32 %v21, %v52
    %v60 = vand.u32 2147483647, %v46
    %v61 = vand.u32 2147483647, %v47
    %v62 = vand.u32 2147483647, %v48
    %v63 = vand.u32 2147483647, %v49
    %v64 = vand.u32 2147483647, %v50
    %v65 = vand.u32 2147483647, %v51
    %v66 = vand.u32 2147483647, %v52
    %v67 = vadd.f32 %v60, %v61
    %v68 = vadd.f32 %v67, %v62
    %v69 = vadd.f32 %v68, %v63
    %v70 = vadd.f32 %v69, %v64
    %v71 = vadd.f32 %v70, %v65
    %v72 = vadd.f32 %v71, %v66
    %73 = vadd.xlane.f32.xlu0 %v72
    %v74 = vpop.xlane.xlu0 %73
    %v75 = vrot.slane %v74, 4
    %v76 = vadd.f32 %v74, %v75
    %v77 = vrot.slane %v76, 2
    %v78 = vadd.f32 %v76, %v77
    %v79 = vrot.slane %v78, 1
    %v80 = vadd.f32 %v78, %v79
    %s81 = vtos %v80
    %v82 = vstv %s81
    %v83 = vmul.f32 %v82, 0.00015943877
    %v84 = vld [vmem:[%s1 + $0x70] sm:$0xff]
    %v85 = vld [vmem:[%s1 + $0x78] sm:$0xff]
    %v86 = vld [vmem:[%s1 + $0x80] sm:$0xff]
    %v87 = vld [vmem:[%s1 + $0x88] sm:$0xff]
    %v88 = vld [vmem:[%s1 + $0x90] sm:$0xff]
    %v89 = vld [vmem:[%s1 + $0x98] sm:$0xff]
    %v90 = vld [vmem:[%s1 + $0xa0] sm:$0xff]
    %v91 = vadd.f32 %v53, %v84
    %v92 = vadd.f32 %v54, %v85
    %v93 = vadd.f32 %v55, %v86
    %v94 = vadd.f32 %v56, %v87
    %v95 = vadd.f32 %v57, %v88
    %v96 = vadd.f32 %v58, %v89
    %v97 = vadd.f32 %v59, %v90
    %v98 = vand.u32 2147483647, %v84
    %v99 = vand.u32 2147483647, %v85
    %v100 = vand.u32 2147483647, %v86
    %v101 = vand.u32 2147483647, %v87
    %v102 = vand.u32 2147483647, %v88
    %v103 = vand.u32 2147483647, %v89
    %v104 = vand.u32 2147483647, %v90
    %v105 = vadd.f32 %v98, %v99
    %v106 = vadd.f32 %v105, %v100
    %v107 = vadd.f32 %v106, %v101
    %v108 = vadd.f32 %v107, %v102
    %v109 = vadd.f32 %v108, %v103
    %v110 = vadd.f32 %v109, %v104
    %111 = vadd.xlane.f32.xlu0 %v110
    %v112 = vpop.xlane.xlu0 %111
    %v113 = vrot.slane %v112, 4
    %v114 = vadd.f32 %v112, %v113
    %v115 = vrot.slane %v114, 2
    %v116 = vadd.f32 %v114, %v115
    %v117 = vrot.slane %v116, 1
    %v118 = vadd.f32 %v116, %v117
    %s119 = vtos %v118
    %v120 = vstv %s119
    %v121 = vmul.f32 %v120, 0.00015943877
    %v122 = vld [vmem:[%s1 + $0xa8] sm:$0xff]
    %v123 = vld [vmem:[%s1 + $0xb0] sm:$0xff]
    %v124 = vld [vmem:[%s1 + $0xb8] sm:$0xff]
    %v125 = vld [vmem:[%s1 + $0xc0] sm:$0xff]
    %v126 = vld [vmem:[%s1 + $0xc8] sm:$0xff]
    %v127 = vld [vmem:[%s1 + $0xd0] sm:$0xff]
    %v128 = vld [vmem:[%s1 + $0xd8] sm:$0xff]
    %v129 = vadd.f32 %v91, %v122
    %v130 = vadd.f32 %v92, %v123
    %v131 = vadd.f32 %v93, %v124
    %v132 = vadd.f32 %v94, %v125
    %v133 = vadd.f32 %v95, %v126
    %v134 = vadd.f32 %v96, %v127
    %v135 = vadd.f32 %v97, %v128
    %v136 = vand.u32 2147483647, %v122
    %v137 = vand.u32 2147483647, %v123
    %v138 = vand.u32 2147483647, %v124
    %v139 = vand.u32 2147483647, %v125
    %v140 = vand.u32 2147483647, %v126
    %v141 = vand.u32 2147483647, %v127
    %v142 = vand.u32 2147483647, %v128
    %v143 = vadd.f32 %v136, %v137
    %v144 = vadd.f32 %v143, %v138
    %v145 = vadd.f32 %v144, %v139
    %v146 = vadd.f32 %v145, %v140
    %v147 = vadd.f32 %v146, %v141
    %v148 = vadd.f32 %v147, %v142
    %149 = vadd.xlane.f32.xlu0 %v148
    %v150 = vpop.xlane.xlu0 %149
    %v151 = vrot.slane %v150, 4
    %v152 = vadd.f32 %v150, %v151
    %v153 = vrot.slane %v152, 2
    %v154 = vadd.f32 %v152, %v153
    %v155 = vrot.slane %v154, 1
    %v156 = vadd.f32 %v154, %v155
    %s157 = vtos %v156
    %v158 = vstv %s157
    %v159 = vmul.f32 %v158, 0.00015943877
    %vm160 = vcmp.gt.f32.partialorder %v129, 0.0
    %vm161 = vcmp.gt.f32.partialorder %v130, 0.0
    %vm162 = vcmp.gt.f32.partialorder %v131, 0.0
    %vm163 = vcmp.gt.f32.partialorder %v132, 0.0
    %vm164 = vcmp.gt.f32.partialorder %v133, 0.0
    %vm165 = vcmp.gt.f32.partialorder %v134, 0.0
    %vm166 = vcmp.gt.f32.partialorder %v135, 0.0
    %v167 = vsel %vm160, 1.0, -1.0
    %v168 = vsel %vm161, 1.0, -1.0
    %v169 = vsel %vm162, 1.0, -1.0
    %v170 = vsel %vm163, 1.0, -1.0
    %v171 = vsel %vm164, 1.0, -1.0
    %v172 = vsel %vm165, 1.0, -1.0
    %v173 = vsel %vm166, 1.0, -1.0
    %v174 = vld [vmem:[%s0] sm:$0xff]
    %v175 = vld [vmem:[%s0 + $0x8] sm:$0x3f]
    %178 = vst [vmem:[#allocation1] ss:$4 sm:$0xff] %v174
    %s179 = scalar_lea.vmem [#allocation1], 32
    %180 = vst [vmem:[%s179] ss:$4 sm:$0xff] %v175
    %v181 = vld.sshfl [vmem:[#allocation1] sm:$0xff pattern:$0x73625140]
    %v182 = vld.sshfl [vmem:[#allocation1 + $0x8] sm:$0xff pattern:$0x73625140]
    %v183 = vld.sshfl [vmem:[#allocation1 + $0x10] sm:$0xff pattern:$0x73625140]
    %v184 = vld.sshfl [vmem:[#allocation1 + $0x18] sm:$0xff pattern:$0x73625140]
    %v185 = vld.sshfl [vmem:[#allocation1 + $0x20] sm:$0xff pattern:$0x73625140]
    %v186 = vld.sshfl [vmem:[#allocation1 + $0x28] sm:$0xff pattern:$0x73625140]
    %v187 = vld.sshfl [vmem:[#allocation1 + $0x30] sm:$0xff pattern:$0x73625140]
    %195 = vmatpush.xpose.msra.mxu0 0.0
    %196 = vmatpush.xpose.msra.mxu0 0.0
    %197 = vmatpush.xpose.msra.mxu0 0.0
    %198 = vmatpush.xpose.msra.mxu0 0.0
    %199 = vmatpush.xpose.msra.mxu0 0.0
    %200 = vmatpush.xpose.msra.mxu0 0.0
    %201 = vmatpush.xpose.msra.mxu0 0.0
    %202 = vmatpush.xpose.msra.mxu0 0.0
    %203 = vmatpush.xpose.msra.mxu0 0.0
    %204 = vmatpush.xpose.msra.mxu0 0.0
    %205 = vmatpush.xpose.msra.mxu0 0.0
    %206 = vmatpush.xpose.msra.mxu0 0.0
    %207 = vmatpush.xpose.msra.mxu0 0.0
    %208 = vmatpush.xpose.msra.mxu0 0.0
    %209 = vmatpush.xpose.msra.mxu0 0.0
    %210 = vmatpush.xpose.msra.mxu0 %v167
    %211 = vmatmul.f32.gmra.mxu0 %v181
    %v212 = vpop.f32.mrf.mxu0
    %v213 = vadd.f32 0.0, %v212
    %214 = vdwg.mxu0
    %215 = vmatpush.xpose.msra.mxu0 0.0
    %216 = vmatpush.xpose.msra.mxu0 0.0
    %217 = vmatpush.xpose.msra.mxu0 0.0
    %218 = vmatpush.xpose.msra.mxu0 0.0
    %219 = vmatpush.xpose.msra.mxu0 0.0
    %220 = vmatpush.xpose.msra.mxu0 0.0
    %221 = vmatpush.xpose.msra.mxu0 0.0
    %222 = vmatpush.xpose.msra.mxu0 0.0
    %223 = vmatpush.xpose.msra.mxu0 0.0
    %224 = vmatpush.xpose.msra.mxu0 0.0
    %225 = vmatpush.xpose.msra.mxu0 0.0
    %226 = vmatpush.xpose.msra.mxu0 0.0
    %227 = vmatpush.xpose.msra.mxu0 0.0
    %228 = vmatpush.xpose.msra.mxu0 0.0
    %229 = vmatpush.xpose.msra.mxu0 0.0
    %230 = vmatpush.xpose.msra.mxu0 %v168
    %231 = vmatmul.f32.gmra.mxu0 %v182
    %v232 = vpop.f32.mrf.mxu0
    %v233 = vadd.f32 %v213, %v232
    %234 = vdwg.mxu0
    %235 = vmatpush.xpose.msra.mxu0 0.0
    %236 = vmatpush.xpose.msra.mxu0 0.0
    %237 = vmatpush.xpose.msra.mxu0 0.0
    %238 = vmatpush.xpose.msra.mxu0 0.0
    %239 = vmatpush.xpose.msra.mxu0 0.0
    %240 = vmatpush.xpose.msra.mxu0 0.0
    %241 = vmatpush.xpose.msra.mxu0 0.0
    %242 = vmatpush.xpose.msra.mxu0 0.0
    %243 = vmatpush.xpose.msra.mxu0 0.0
    %244 = vmatpush.xpose.msra.mxu0 0.0
    %245 = vmatpush.xpose.msra.mxu0 0.0
    %246 = vmatpush.xpose.msra.mxu0 0.0
    %247 = vmatpush.xpose.msra.mxu0 0.0
    %248 = vmatpush.xpose.msra.mxu0 0.0
    %249 = vmatpush.xpose.msra.mxu0 0.0
    %250 = vmatpush.xpose.msra.mxu0 %v169
    %251 = vmatmul.f32.gmra.mxu0 %v183
    %v252 = vpop.f32.mrf.mxu0
    %v253 = vadd.f32 %v233, %v252
    %254 = vdwg.mxu0
    %255 = vmatpush.xpose.msra.mxu0 0.0
    %256 = vmatpush.xpose.msra.mxu0 0.0
    %257 = vmatpush.xpose.msra.mxu0 0.0
    %258 = vmatpush.xpose.msra.mxu0 0.0
    %259 = vmatpush.xpose.msra.mxu0 0.0
    %260 = vmatpush.xpose.msra.mxu0 0.0
    %261 = vmatpush.xpose.msra.mxu0 0.0
    %262 = vmatpush.xpose.msra.mxu0 0.0
    %263 = vmatpush.xpose.msra.mxu0 0.0
    %264 = vmatpush.xpose.msra.mxu0 0.0
    %265 = vmatpush.xpose.msra.mxu0 0.0
    %266 = vmatpush.xpose.msra.mxu0 0.0
    %267 = vmatpush.xpose.msra.mxu0 0.0
    %268 = vmatpush.xpose.msra.mxu0 0.0
    %269 = vmatpush.xpose.msra.mxu0 0.0
    %270 = vmatpush.xpose.msra.mxu0 %v170
    %271 = vmatmul.f32.gmra.mxu0 %v184
    %v272 = vpop.f32.mrf.mxu0
    %v273 = vadd.f32 %v253, %v272
    %274 = vdwg.mxu0
    %275 = vmatpush.xpose.msra.mxu0 0.0
    %276 = vmatpush.xpose.msra.mxu0 0.0
    %277 = vmatpush.xpose.msra.mxu0 0.0
    %278 = vmatpush.xpose.msra.mxu0 0.0
    %279 = vmatpush.xpose.msra.mxu0 0.0
    %280 = vmatpush.xpose.msra.mxu0 0.0
    %281 = vmatpush.xpose.msra.mxu0 0.0
    %282 = vmatpush.xpose.msra.mxu0 0.0
    %283 = vmatpush.xpose.msra.mxu0 0.0
    %284 = vmatpush.xpose.msra.mxu0 0.0
    %285 = vmatpush.xpose.msra.mxu0 0.0
    %286 = vmatpush.xpose.msra.mxu0 0.0
    %287 = vmatpush.xpose.msra.mxu0 0.0
    %288 = vmatpush.xpose.msra.mxu0 0.0
    %289 = vmatpush.xpose.msra.mxu0 0.0
    %290 = vmatpush.xpose.msra.mxu0 %v171
    %291 = vmatmul.f32.gmra.mxu0 %v185
    %v292 = vpop.f32.mrf.mxu0
    %v293 = vadd.f32 %v273, %v292
    %294 = vdwg.mxu0
    %295 = vmatpush.xpose.msra.mxu0 0.0
    %296 = vmatpush.xpose.msra.mxu0 0.0
    %297 = vmatpush.xpose.msra.mxu0 0.0
    %298 = vmatpush.xpose.msra.mxu0 0.0
    %299 = vmatpush.xpose.msra.mxu0 0.0
    %300 = vmatpush.xpose.msra.mxu0 0.0
    %301 = vmatpush.xpose.msra.mxu0 0.0
    %302 = vmatpush.xpose.msra.mxu0 0.0
    %303 = vmatpush.xpose.msra.mxu0 0.0
    %304 = vmatpush.xpose.msra.mxu0 0.0
    %305 = vmatpush.xpose.msra.mxu0 0.0
    %306 = vmatpush.xpose.msra.mxu0 0.0
    %307 = vmatpush.xpose.msra.mxu0 0.0
    %308 = vmatpush.xpose.msra.mxu0 0.0
    %309 = vmatpush.xpose.msra.mxu0 0.0
    %310 = vmatpush.xpose.msra.mxu0 %v172
    %311 = vmatmul.f32.gmra.mxu0 %v186
    %v312 = vpop.f32.mrf.mxu0
    %v313 = vadd.f32 %v293, %v312
    %314 = vdwg.mxu0
    %315 = vmatpush.xpose.msra.mxu0 0.0
    %316 = vmatpush.xpose.msra.mxu0 0.0
    %317 = vmatpush.xpose.msra.mxu0 0.0
    %318 = vmatpush.xpose.msra.mxu0 0.0
    %319 = vmatpush.xpose.msra.mxu0 0.0
    %320 = vmatpush.xpose.msra.mxu0 0.0
    %321 = vmatpush.xpose.msra.mxu0 0.0
    %322 = vmatpush.xpose.msra.mxu0 0.0
    %323 = vmatpush.xpose.msra.mxu0 0.0
    %324 = vmatpush.xpose.msra.mxu0 0.0
    %325 = vmatpush.xpose.msra.mxu0 0.0
    %326 = vmatpush.xpose.msra.mxu0 0.0
    %327 = vmatpush.xpose.msra.mxu0 0.0
    %328 = vmatpush.xpose.msra.mxu0 0.0
    %329 = vmatpush.xpose.msra.mxu0 0.0
    %330 = vmatpush.xpose.msra.mxu0 %v173
    %331 = vmatmul.f32.gmra.mxu0 %v187
    %v332 = vpop.f32.mrf.mxu0
    %v333 = vadd.f32 %v313, %v332
    %334 = vdwg.mxu0
    %v335 = vmax.f32 %v333, 0.0
    %v336 = vld [vmem:[%s2] sm:$0xff]
    %v337 = vmul.f32 %v45, %v336
    %v338 = vld [vmem:[%s2 + $0x8] sm:$0xff]
    %v339 = vmul.f32 %v83, %v338
    %v340 = vadd.f32 %v337, %v339
    %v341 = vld [vmem:[%s2 + $0x10] sm:$0xff]
    %v342 = vmul.f32 %v121, %v341
    %v343 = vadd.f32 %v340, %v342
    %v344 = vld [vmem:[%s2 + $0x18] sm:$0xff]
    %v345 = vmul.f32 %v159, %v344
    %v346 = vadd.f32 %v343, %v345
    %vm347 = vcmask 64512
    %v349 = vsel %vm347, %v335, 0
    %351 = vmatpush.msra.mxu0 0.0
    %352 = vmatpush.msra.mxu0 0.0
    %353 = vmatpush.msra.mxu0 0.0
    %354 = vmatpush.msra.mxu0 0.0
    %355 = vmatpush.msra.mxu0 0.0
    %356 = vmatpush.msra.mxu0 0.0
    %357 = vmatpush.msra.mxu0 0.0
    %358 = vmatpush.msra.mxu0 0.0
    %359 = vmatpush.msra.mxu0 0.0
    %360 = vmatpush.msra.mxu0 0.0
    %361 = vmatpush.msra.mxu0 0.0
    %362 = vmatpush.msra.mxu0 0.0
    %363 = vmatpush.msra.mxu0 0.0
    %364 = vmatpush.msra.mxu0 0.0
    %365 = vmatpush.msra.mxu0 0.0
    %366 = vmatpush.msra.mxu0 %v346
    %367 = vmatmul.f32.gmra.mxu0 %v349
    %v368 = vpop.f32.mrf.mxu0
    %v369 = vadd.f32 0.0, %v368
    %370 = vdwg.mxu0
    %371 = vst [vmem:[#allocation2] sm:$0x3] %v369
    // Predicated region
    $region14: #{tiled_nn_forward.1} parent=1 // pred_check
      _
    $region15: #{tiled_nn_forward.1} parent=1 // pred_check_branch
      %373 = sbr.rel (0) target = $region17
    $region16: #{tiled_nn_forward.1} parent=1 // pred_region
      %375 = vsyncadd [#allocation3], 0
      %s377 = sshll.u32 [#allocation2], 4
      %s378 = int_to_ptr.vmem [resolvable:$true] %s377
      %s379 = sshll.u32 %s3, 4
      %s380 = int_to_ptr.hbm [resolvable:$true] %s379
      %382 = dma.vmem_to_hbm [thread:$0]  %s378, 32, %s380, [#allocation3]
    $region17: #{tiled_nn_forward.1} parent=1 // pred_fallthru
      _
    // Predicated region
    $region18: #{tiled_nn_forward.1} parent=1 // pred_check
      _
    $region19: #{tiled_nn_forward.1} parent=1 // pred_check_branch
      %384 = sbr.rel (0) target = $region21
    $region20: #{tiled_nn_forward.1} parent=1 // pred_region
      %386 = dma.done [#allocation3], 32
    $region21: #{tiled_nn_forward.1} parent=1 // pred_fallthru
      _
    %387 = vsyncpa [#allocation3], 1

</llo_original>
